<compile_context>
chip_gen: v6e
topology: v6e:2x2x1
jax: 0.10.0
libtpu: 0.0.40
codegen_flags: <defaults>
</compile_context>

<pallas_src>
import jax
import jax.numpy as jnp
import numpy as np
from jax.experimental import pallas as pl
from jax.experimental.pallas import tpu as pltpu

LN_EPS = 1e-5


def _moe_kernel(x_ref, wfirst_ref, bfirst_ref, wg2_ref, bg2_ref,
                w2_ref, b2_ref, gamma_ref, beta_ref, out_ref):
    """Single-program MoE forward: gating + all experts + LayerNorm."""
    B = x_ref.shape[0]
    D_exp = gamma_ref.shape[-1]
    E = b2_ref.shape[0]

    x = x_ref[...].astype(wfirst_ref.dtype)                    # [B, D_in] bf16

    # --- fused first layer: gating hidden + every expert's hidden in one wide
    #     MXU pass (bf16 x bf16 -> f32 acc), bias add + ReLU in f32.
    h_all = jnp.maximum(
        jnp.dot(x, wfirst_ref[...], preferred_element_type=jnp.float32)
        + bfirst_ref[...], 0.0)                                 # [B, (E+1)*D_exp] f32

    # --- gating network tail: Linear -> softmax (f32 stats, EUP reciprocal)
    gh = h_all[:, :D_exp].astype(wg2_ref.dtype)
    logits = (jnp.dot(gh, wg2_ref[...], preferred_element_type=jnp.float32)
              + bg2_ref[...])                                   # [B, E] f32
    m = jnp.max(logits, axis=-1, keepdims=True)
    p = jnp.exp(logits - m)
    gate = p * pl.reciprocal(jnp.sum(p, axis=-1, keepdims=True),
                             approx=True)                       # [B, E] f32

    # --- fused expert second layer: pre-scale the hidden slab by the gate
    #     (static lane-broadcast per expert, stays 2-D / lane-aligned), then a
    #     single K = E*D_exp MXU pass; biases become gate-weighted gate @ b2.
    # TODO(synk): dropout skipped (eval-mode identity); training-mode dropout
    # would apply pltpu.prng_random_bits-based masking to h_all here.
    gate_slab = jnp.concatenate(
        [jnp.broadcast_to(gate[:, e:e + 1], (B, D_exp)) for e in range(E)],
        axis=-1)                                                # [B, E*D_exp] f32
    h_scaled = (h_all[:, D_exp:] * gate_slab).astype(w2_ref.dtype)
    acc = jnp.dot(h_scaled, w2_ref[...],
                  preferred_element_type=jnp.float32)           # [B, D_exp] f32
    acc = acc + jnp.dot(gate, b2_ref[...],
                        preferred_element_type=jnp.float32)     # gate-weighted bias

    # --- LayerNorm over expert_dim (f32) and writeback
    mu = jnp.mean(acc, axis=-1, keepdims=True)
    var = jnp.mean((acc - mu) ** 2, axis=-1, keepdims=True)
    norm = (acc - mu) * jax.lax.rsqrt(var + LN_EPS)
    out_ref[...] = (norm * gamma_ref[...] + beta_ref[...]).astype(out_ref.dtype)


def prepare_params(params):
    """One-time packing / casting of module weights into kernel operands.

    Call once (or under jit with the params as constants); the forward pass
    then uses these operands directly with no per-call transpose/concat.
    """
    D_in = params["wg1"].shape[0]
    E, _, D_exp = params["w1"].shape

    # Fuse gating-hidden weight with all expert first-layer weights along the
    # output (lane) axis: one (D_in, (E+1)*D_exp) bf16 matmul operand.
    w1_flat = params["w1"].transpose(1, 0, 2).reshape(D_in, E * D_exp)
    w_first = jnp.concatenate([params["wg1"], w1_flat],
                              axis=1).astype(jnp.bfloat16)
    b1_flat = params["b1"].reshape(1, E * D_exp)
    b_first = jnp.concatenate([params["bg1"], b1_flat], axis=1)   # f32 bias

    return {
        "w_first": w_first,                                       # bf16
        "b_first": b_first,                                       # f32
        "wg2": params["wg2"].astype(jnp.bfloat16),                # bf16
        "bg2": params["bg2"],                                     # f32
        "w2_flat": params["w2"].reshape(E * D_exp, D_exp).astype(jnp.bfloat16),
        "b2_flat": params["b2"].reshape(E, D_exp),                # f32
        "gamma": params["gamma"],
        "beta": params["beta"],
    }


def enhanced_moe(x, prep):
    """Forward pass. `prep` must come from prepare_params() (no repacking here)."""
    B, _ = x.shape
    D_exp = prep["gamma"].shape[-1]

    vmem_spec = pl.BlockSpec(memory_space=pltpu.MemorySpace.VMEM)

    # Single invocation, whole (tiny) operands resident in VMEM — no grid, no
    # pipelining.  For large B, add a batch-tile grid axis with
    # dimension_semantics=("parallel",) (shards across v7x's 2 TensorCores)
    # and keep tiles well under the 32 MiB scoped-VMEM default.
    return pl.pallas_call(
        _moe_kernel,
        out_shape=jax.ShapeDtypeStruct((B, D_exp), x.dtype),
        in_specs=[vmem_spec] * 9,
        out_specs=vmem_spec,
        compiler_params=pltpu.CompilerParams(
            vmem_limit_bytes=32 * 1024 * 1024),
    )(x, prep["w_first"], prep["b_first"], prep["wg2"], prep["bg2"],
      prep["w2_flat"], prep["b2_flat"], prep["gamma"], prep["beta"])


def init_params(key, input_dim, num_experts, expert_dim):
    ks = jax.random.split(key, 8)
    scale = 0.05
    return {
        # gating network
        "wg1": scale * jax.random.normal(ks[0], (input_dim, expert_dim), jnp.float32),
        "bg1": scale * jax.random.normal(ks[1], (1, expert_dim), jnp.float32),
        "wg2": scale * jax.random.normal(ks[2], (expert_dim, num_experts), jnp.float32),
        "bg2": scale * jax.random.normal(ks[3], (1, num_experts), jnp.float32),
        # experts (stacked)
        "w1": scale * jax.random.normal(ks[4], (num_experts, input_dim, expert_dim), jnp.float32),
        "b1": scale * jax.random.normal(ks[5], (num_experts, 1, expert_dim), jnp.float32),
        "w2": scale * jax.random.normal(ks[6], (num_experts, expert_dim, expert_dim), jnp.float32),
        "b2": scale * jax.random.normal(ks[7], (num_experts, 1, expert_dim), jnp.float32),
        # layer norm
        "gamma": jnp.ones((1, expert_dim), jnp.float32),
        "beta": jnp.zeros((1, expert_dim), jnp.float32),
    }


def enhanced_moe_ref(x, p):
    """Pure-JAX f32 reference matching the PyTorch forward (eval mode)."""
    gh = jnp.maximum(x @ p["wg1"] + p["bg1"][0], 0.0)
    logits = gh @ p["wg2"] + p["bg2"][0]
    gate = jax.nn.softmax(logits, axis=-1)
    expert_outs = []
    for e in range(p["w1"].shape[0]):
        h = jnp.maximum(x @ p["w1"][e] + p["b1"][e, 0], 0.0)
        expert_outs.append(h @ p["w2"][e] + p["b2"][e, 0])
    eo = jnp.stack(expert_outs, axis=1)                      # [B, E, D_exp]
    out = jnp.sum(gate[..., None] * eo, axis=1)              # [B, D_exp]
    mu = out.mean(-1, keepdims=True)
    var = ((out - mu) ** 2).mean(-1, keepdims=True)
    return (out - mu) / jnp.sqrt(var + LN_EPS) * p["gamma"][0] + p["beta"][0]


if __name__ == "__main__":
    B, INPUT_DIM, NUM_EXPERTS, EXPERT_DIM = 8, 32, 4, 128

    key = jax.random.PRNGKey(0)
    kx, kp = jax.random.split(key)
    x = jax.random.normal(kx, (B, INPUT_DIM), jnp.float32)
    params = init_params(kp, INPUT_DIM, NUM_EXPERTS, EXPERT_DIM)

    # One-time weight packing + bf16 cast, hoisted out of the forward.
    prep = jax.tree_util.tree_map(jax.block_until_ready, prepare_params(params))

    out = enhanced_moe(x, prep)
    out = jax.block_until_ready(out)

    # f32 reference; tolerance widened to cover bf16 matmul operands
    # (accumulation stays f32 via preferred_element_type).
    ref = enhanced_moe_ref(x, params)
    np.testing.assert_allclose(np.asarray(out, dtype=np.float32),
                               np.asarray(ref), rtol=2e-2, atol=2e-2)
    print("KERNEL_OK")
</pallas_src>

<mosaic_0001>
module attributes {stable_mosaic.version = 11 : i64} {
  func.func @_moe_kernel(%arg0: memref<8x32xf32, #tpu.memory_space<vmem>>, %arg1: memref<32x640xbf16, #tpu.memory_space<vmem>>, %arg2: memref<1x640xf32, #tpu.memory_space<vmem>>, %arg3: memref<128x4xbf16, #tpu.memory_space<vmem>>, %arg4: memref<1x4xf32, #tpu.memory_space<vmem>>, %arg5: memref<512x128xbf16, #tpu.memory_space<vmem>>, %arg6: memref<4x128xf32, #tpu.memory_space<vmem>>, %arg7: memref<1x128xf32, #tpu.memory_space<vmem>>, %arg8: memref<1x128xf32, #tpu.memory_space<vmem>>, %arg9: memref<8x128xf32, #tpu.memory_space<vmem>>) attributes {dimension_semantics = [], scalar_prefetch = 0 : i64, scratch_operands = 0 : i64, tpu.core_type = #tpu.core_type<tc>} {
    %c0 = arith.constant 0 : index
    %c0_0 = arith.constant 0 : index
    %0 = vector.load %arg0[%c0, %c0_0] : memref<8x32xf32, #tpu.memory_space<vmem>>, vector<8x32xf32>
    %1 = arith.truncf %0 : vector<8x32xf32> to vector<8x32xbf16>
    %c0_1 = arith.constant 0 : index
    %c0_2 = arith.constant 0 : index
    %2 = vector.load %arg1[%c0_1, %c0_2] : memref<32x640xbf16, #tpu.memory_space<vmem>>, vector<32x640xbf16>
    %cst = arith.constant dense<0.000000e+00> : vector<8x640xf32>
    %3 = tpu.matmul %1, %2, %cst {dimension_numbers = #tpu.dot_dimension_numbers<[1], [0], [0], [1], [0, 0, 1, 1], [], []>} : vector<8x32xbf16>, vector<32x640xbf16>, vector<8x640xf32> -> vector<8x640xf32>
    %c0_3 = arith.constant 0 : index
    %c0_4 = arith.constant 0 : index
    %4 = vector.load %arg2[%c0_3, %c0_4] : memref<1x640xf32, #tpu.memory_space<vmem>>, vector<1x640xf32>
    %5 = vector.broadcast %4 : vector<1x640xf32> to vector<8x640xf32>
    %6 = arith.addf %3, %5 : vector<8x640xf32>
    %cst_5 = arith.constant 0.000000e+00 : f32
    %7 = vector.broadcast %cst_5 : f32 to vector<8x640xf32>
    %8 = arith.maximumf %6, %7 : vector<8x640xf32>
    %9 = vector.extract_strided_slice %8 {offsets = [0, 0], sizes = [8, 128], strides = [1, 1]} : vector<8x640xf32> to vector<8x128xf32>
    %10 = arith.truncf %9 : vector<8x128xf32> to vector<8x128xbf16>
    %c0_6 = arith.constant 0 : index
    %c0_7 = arith.constant 0 : index
    %11 = vector.load %arg3[%c0_6, %c0_7] : memref<128x4xbf16, #tpu.memory_space<vmem>>, vector<128x4xbf16>
    %cst_8 = arith.constant dense<0.000000e+00> : vector<8x4xf32>
    %12 = tpu.matmul %10, %11, %cst_8 {dimension_numbers = #tpu.dot_dimension_numbers<[1], [0], [0], [1], [0, 0, 1, 1], [], []>} : vector<8x128xbf16>, vector<128x4xbf16>, vector<8x4xf32> -> vector<8x4xf32>
    %c0_9 = arith.constant 0 : index
    %c0_10 = arith.constant 0 : index
    %13 = vector.load %arg4[%c0_9, %c0_10] : memref<1x4xf32, #tpu.memory_space<vmem>>, vector<1x4xf32>
    %14 = vector.broadcast %13 : vector<1x4xf32> to vector<8x4xf32>
    %15 = arith.addf %12, %14 : vector<8x4xf32>
    %cst_11 = arith.constant dense<0xFF800000> : vector<8xf32>
    %16 = vector.multi_reduction <maximumf>, %15, %cst_11 [1] : vector<8x4xf32> to vector<8xf32>
    %17 = vector.shape_cast %16 : vector<8xf32> to vector<8x1xf32>
    %18 = vector.broadcast %17 : vector<8x1xf32> to vector<8x4xf32>
    %19 = arith.subf %15, %18 : vector<8x4xf32>
    %20 = math.exp %19 : vector<8x4xf32>
    %cst_12 = arith.constant dense<0.000000e+00> : vector<8xf32>
    %21 = vector.multi_reduction <add>, %20, %cst_12 [1] : vector<8x4xf32> to vector<8xf32>
    %22 = vector.shape_cast %21 : vector<8xf32> to vector<8x1xf32>
    %23 = tpu.reciprocal %22 {approx = true} : vector<8x1xf32> -> vector<8x1xf32>
    %24 = vector.broadcast %23 : vector<8x1xf32> to vector<8x4xf32>
    %25 = arith.mulf %20, %24 : vector<8x4xf32>
    %26 = vector.extract_strided_slice %25 {offsets = [0, 0], sizes = [8, 1], strides = [1, 1]} : vector<8x4xf32> to vector<8x1xf32>
    %27 = vector.shape_cast %26 : vector<8x1xf32> to vector<8x1xf32>
    %28 = vector.broadcast %27 : vector<8x1xf32> to vector<8x128xf32>
    %29 = vector.extract_strided_slice %25 {offsets = [0, 1], sizes = [8, 1], strides = [1, 1]} : vector<8x4xf32> to vector<8x1xf32>
    %30 = vector.shape_cast %29 : vector<8x1xf32> to vector<8x1xf32>
    %31 = vector.broadcast %30 : vector<8x1xf32> to vector<8x128xf32>
    %32 = vector.extract_strided_slice %25 {offsets = [0, 2], sizes = [8, 1], strides = [1, 1]} : vector<8x4xf32> to vector<8x1xf32>
    %33 = vector.shape_cast %32 : vector<8x1xf32> to vector<8x1xf32>
    %34 = vector.broadcast %33 : vector<8x1xf32> to vector<8x128xf32>
    %35 = vector.extract_strided_slice %25 {offsets = [0, 3], sizes = [8, 1], strides = [1, 1]} : vector<8x4xf32> to vector<8x1xf32>
    %36 = vector.shape_cast %35 : vector<8x1xf32> to vector<8x1xf32>
    %37 = vector.broadcast %36 : vector<8x1xf32> to vector<8x128xf32>
    %38 = tpu.concatenate %28, %31, %34, %37 in 1 : vector<8x128xf32>, vector<8x128xf32>, vector<8x128xf32>, vector<8x128xf32> -> vector<8x512xf32>
    %39 = vector.extract_strided_slice %8 {offsets = [0, 128], sizes = [8, 512], strides = [1, 1]} : vector<8x640xf32> to vector<8x512xf32>
    %40 = arith.mulf %39, %38 : vector<8x512xf32>
    %41 = arith.truncf %40 : vector<8x512xf32> to vector<8x512xbf16>
    %c0_13 = arith.constant 0 : index
    %c0_14 = arith.constant 0 : index
    %42 = vector.load %arg5[%c0_13, %c0_14] : memref<512x128xbf16, #tpu.memory_space<vmem>>, vector<512x128xbf16>
    %cst_15 = arith.constant dense<0.000000e+00> : vector<8x128xf32>
    %43 = tpu.matmul %41, %42, %cst_15 {dimension_numbers = #tpu.dot_dimension_numbers<[1], [0], [0], [1], [0, 0, 1, 1], [], []>} : vector<8x512xbf16>, vector<512x128xbf16>, vector<8x128xf32> -> vector<8x128xf32>
    %c0_16 = arith.constant 0 : index
    %c0_17 = arith.constant 0 : index
    %44 = vector.load %arg6[%c0_16, %c0_17] : memref<4x128xf32, #tpu.memory_space<vmem>>, vector<4x128xf32>
    %cst_18 = arith.constant dense<0.000000e+00> : vector<8x128xf32>
    %45 = tpu.matmul %25, %44, %cst_18 {dimension_numbers = #tpu.dot_dimension_numbers<[1], [0], [0], [1], [0, 0, 1, 1], [], []>} : vector<8x4xf32>, vector<4x128xf32>, vector<8x128xf32> -> vector<8x128xf32>
    %46 = arith.addf %43, %45 : vector<8x128xf32>
    %cst_19 = arith.constant dense<0.000000e+00> : vector<8xf32>
    %47 = vector.multi_reduction <add>, %46, %cst_19 [1] : vector<8x128xf32> to vector<8xf32>
    %48 = vector.shape_cast %47 : vector<8xf32> to vector<8x1xf32>
    %cst_20 = arith.constant 1.280000e+02 : f32
    %49 = vector.broadcast %cst_20 : f32 to vector<8x1xf32>
    %50 = arith.divf %48, %49 : vector<8x1xf32>
    %51 = vector.broadcast %50 : vector<8x1xf32> to vector<8x128xf32>
    %52 = arith.subf %46, %51 : vector<8x128xf32>
    %53 = arith.mulf %52, %52 : vector<8x128xf32>
    %cst_21 = arith.constant dense<0.000000e+00> : vector<8xf32>
    %54 = vector.multi_reduction <add>, %53, %cst_21 [1] : vector<8x128xf32> to vector<8xf32>
    %55 = vector.shape_cast %54 : vector<8xf32> to vector<8x1xf32>
    %cst_22 = arith.constant 1.280000e+02 : f32
    %56 = vector.broadcast %cst_22 : f32 to vector<8x1xf32>
    %57 = arith.divf %55, %56 : vector<8x1xf32>
    %58 = vector.broadcast %50 : vector<8x1xf32> to vector<8x128xf32>
    %59 = arith.subf %46, %58 : vector<8x128xf32>
    %cst_23 = arith.constant 9.99999974E-6 : f32
    %60 = vector.broadcast %cst_23 : f32 to vector<8x1xf32>
    %61 = arith.addf %57, %60 : vector<8x1xf32>
    %62 = math.rsqrt %61 : vector<8x1xf32>
    %63 = vector.broadcast %62 : vector<8x1xf32> to vector<8x128xf32>
    %64 = arith.mulf %59, %63 : vector<8x128xf32>
    %c0_24 = arith.constant 0 : index
    %c0_25 = arith.constant 0 : index
    %65 = vector.load %arg7[%c0_24, %c0_25] : memref<1x128xf32, #tpu.memory_space<vmem>>, vector<1x128xf32>
    %66 = vector.broadcast %65 : vector<1x128xf32> to vector<8x128xf32>
    %67 = arith.mulf %64, %66 : vector<8x128xf32>
    %c0_26 = arith.constant 0 : index
    %c0_27 = arith.constant 0 : index
    %68 = vector.load %arg8[%c0_26, %c0_27] : memref<1x128xf32, #tpu.memory_space<vmem>>, vector<1x128xf32>
    %69 = vector.broadcast %68 : vector<1x128xf32> to vector<8x128xf32>
    %70 = arith.addf %67, %69 : vector<8x128xf32>
    %c0_28 = arith.constant 0 : index
    %c0_29 = arith.constant 0 : index
    %71 = vector.load %arg9[%c0_28, %c0_29] : memref<8x128xf32, #tpu.memory_space<vmem>>, vector<8x128xf32>
    tpu.vector_store %arg9[%c0_28, %c0_29], %70 {strides = array<i32>} : memref<8x128xf32, #tpu.memory_space<vmem>>, vector<8x128xf32>,
    return
  }
}

</mosaic_0001>

<llo_original>
// kernel: tpu_custom_call.1
$region0: #{tpu_custom_call.1}
  #allocation0 [shape = 'u32[]', space=smem, size = 0x4, offset = 0x4, fixed_abs, tag = 'smem constant byte address 0x4 - core index']
  #allocation1 [shape = 'u32[144,128]{1,0:T(1,128)}', space=vmem, size = 0x12000, scoped, tag = 'internal scratch']
  %s0 = inlined_call_operand.vmem [shape: f32[8,32], index: 0, kind: input, shape index: {}]
  %s1 = inlined_call_operand.hbm [shape: bf16[32,640], index: 1, kind: input, shape index: {}]
  %s2 = inlined_call_operand.vmem [shape: f32[1,640], index: 2, kind: input, shape index: {}]
  %s3 = inlined_call_operand.vmem [shape: bf16[128,4], index: 3, kind: input, shape index: {}]
  %s4 = inlined_call_operand.vmem [shape: f32[1,4], index: 4, kind: input, shape index: {}]
  %s5 = inlined_call_operand.hbm [shape: bf16[512,128], index: 5, kind: input, shape index: {}]
  %s6 = inlined_call_operand.vmem [shape: f32[4,128], index: 6, kind: input, shape index: {}]
  %s7 = inlined_call_operand.vmem [shape: f32[1,128], index: 7, kind: input, shape index: {}]
  %s8 = inlined_call_operand.vmem [shape: f32[1,128], index: 8, kind: input, shape index: {}]
  %s9 = inlined_call_operand.hbm [shape: f32[8,128], index: 9, kind: output, shape index: {}]
  %s10 = sld [smem:[#allocation0]]
  $region54: #{tpu_custom_call.1} parent=0
    _
  %s12 = ssub.s32 1, %s10
  %s13 = scalar_select 0, %s12, %s10
  $region1: #{tpu_custom_call.1} parent=0
    #allocation2 [shape = 'u8[40960]{0}', space=vmem, size = 0xa000, scoped, tag = 'input window, operand 1, single buffered']
    #allocation3 [shape = 's32[1]{0}', space=sflag, size = 0x4, scoped, tag = 'scoped memory for tpu_custom_call.1']
    #allocation4 [shape = 's32[1]{0}', space=sflag, size = 0x4, scoped, tag = 'scoped memory for tpu_custom_call.1']
    #allocation5 [shape = 'u8[131072]{0}', space=vmem, size = 0x20000, scoped, tag = 'input window, operand 5, single buffered']
    #allocation6 [shape = 's32[1]{0}', space=sflag, size = 0x4, scoped, tag = 'scoped memory for tpu_custom_call.1']
    #allocation7 [shape = 'u8[4096]{0}', space=vmem, size = 0x1000, scoped, tag = 'output window, operand 0, single buffered']
    %14 = vsyncpa [#allocation3], 0
    %15 = vsyncpa [#allocation6], 0
    %16 = vsyncpa [#allocation4], 0
    // Predicated region
    $region2: #{tpu_custom_call.1} parent=1 // pred_check
      _
    $region3: #{tpu_custom_call.1} parent=1 // pred_check_branch
      %18 = sbr.rel (0) target = $region5
    $region4: #{tpu_custom_call.1} parent=1 // pred_region
      _
    $region5: #{tpu_custom_call.1} parent=1 // pred_fallthru
      _
    // Predicated region
    $region6: #{tpu_custom_call.1} parent=1 // pred_check
      _
    $region7: #{tpu_custom_call.1} parent=1 // pred_check_branch
      %20 = sbr.rel (0) target = $region9
    $region8: #{tpu_custom_call.1} parent=1 // pred_region
      %s22 = ssub.s32 1280, 1280
      %23 = vsyncadd [#allocation3], %s22
      %s24 = sshll.u32 [#allocation2], 4
      %s25 = int_to_ptr.vmem [resolvable:$true] %s24
      %30 = dma.hbm_to_vmem [thread:$0]  %s1, 1280, %s25, [#allocation3], 320, 320, 20
    $region9: #{tpu_custom_call.1} parent=1 // pred_fallthru
      _
    // Predicated region
    $region10: #{tpu_custom_call.1} parent=1 // pred_check
      _
    $region11: #{tpu_custom_call.1} parent=1 // pred_check_branch
      %32 = sbr.rel (0) target = $region13
    $region12: #{tpu_custom_call.1} parent=1 // pred_region
      _
    $region13: #{tpu_custom_call.1} parent=1 // pred_fallthru
      _
    // Predicated region
    $region14: #{tpu_custom_call.1} parent=1 // pred_check
      _
    $region15: #{tpu_custom_call.1} parent=1 // pred_check_branch
      %34 = sbr.rel (0) target = $region17
    $region16: #{tpu_custom_call.1} parent=1 // pred_region
      _
    $region17: #{tpu_custom_call.1} parent=1 // pred_fallthru
      _
    // Predicated region
    $region18: #{tpu_custom_call.1} parent=1 // pred_check
      _
    $region19: #{tpu_custom_call.1} parent=1 // pred_check_branch
      %36 = sbr.rel (0) target = $region21
    $region20: #{tpu_custom_call.1} parent=1 // pred_region
      _
    $region21: #{tpu_custom_call.1} parent=1 // pred_fallthru
      _
    // Predicated region
    $region22: #{tpu_custom_call.1} parent=1 // pred_check
      _
    $region23: #{tpu_custom_call.1} parent=1 // pred_check_branch
      %38 = sbr.rel (0) target = $region25
    $region24: #{tpu_custom_call.1} parent=1 // pred_region
      %s40 = ssub.s32 4096, 4096
      %41 = vsyncadd [#allocation6], %s40
      %s42 = sshll.u32 [#allocation5], 4
      %s43 = int_to_ptr.vmem [resolvable:$true] %s42
      %48 = dma.hbm_to_vmem [thread:$0]  %s5, 4096, %s43, [#allocation6], 64, 64, 4
    $region25: #{tpu_custom_call.1} parent=1 // pred_fallthru
      _
    // Predicated region
    $region26: #{tpu_custom_call.1} parent=1 // pred_check
      _
    $region27: #{tpu_custom_call.1} parent=1 // pred_check_branch
      %50 = sbr.rel (0) target = $region29
    $region28: #{tpu_custom_call.1} parent=1 // pred_region
      _
    $region29: #{tpu_custom_call.1} parent=1 // pred_fallthru
      _
    // Predicated region
    $region30: #{tpu_custom_call.1} parent=1 // pred_check
      _
    $region31: #{tpu_custom_call.1} parent=1 // pred_check_branch
      %52 = sbr.rel (0) target = $region33
    $region32: #{tpu_custom_call.1} parent=1 // pred_region
      _
    $region33: #{tpu_custom_call.1} parent=1 // pred_fallthru
      _
    // Predicated region
    $region34: #{tpu_custom_call.1} parent=1 // pred_check
      _
    $region35: #{tpu_custom_call.1} parent=1 // pred_check_branch
      %54 = sbr.rel (0) target = $region37
    $region36: #{tpu_custom_call.1} parent=1 // pred_region
      _
    $region37: #{tpu_custom_call.1} parent=1 // pred_fallthru
      _
    // Predicated region
    $region38: #{tpu_custom_call.1} parent=1 // pred_check
      _
    $region39: #{tpu_custom_call.1} parent=1 // pred_check_branch
      %56 = sbr.rel (0) target = $region41
    $region40: #{tpu_custom_call.1} parent=1 // pred_region
      %57 = dma.done [#allocation3], 1280
    $region41: #{tpu_custom_call.1} parent=1 // pred_fallthru
      _
    // Predicated region
    $region42: #{tpu_custom_call.1} parent=1 // pred_check
      _
    $region43: #{tpu_custom_call.1} parent=1 // pred_check_branch
      %59 = sbr.rel (0) target = $region45
    $region44: #{tpu_custom_call.1} parent=1 // pred_region
      %60 = dma.done [#allocation6], 4096
    $region45: #{tpu_custom_call.1} parent=1 // pred_fallthru
      _
    %v62 = vld [vmem:[%s0] sm:$0xff]
    %v63 = vpack.c.bf16 %v62, %v62
    %v64 = vld [vmem:[#allocation2] sm:$0xff]
    %v65 = vld [vmem:[#allocation2 + $0x8] sm:$0xff]
    %v66 = vld [vmem:[#allocation2 + $0x10] sm:$0xf]
    %v67 = vld [vmem:[#allocation2 + $0x14] sm:$0xff]
    %v68 = vld [vmem:[#allocation2 + $0x1c] sm:$0xff]
    %v69 = vld [vmem:[#allocation2 + $0x24] sm:$0xf]
    %v70 = vld [vmem:[#allocation2 + $0x28] sm:$0xff]
    %v71 = vld [vmem:[#allocation2 + $0x30] sm:$0xff]
    %v72 = vld [vmem:[#allocation2 + $0x38] sm:$0xf]
    %v73 = vld [vmem:[#allocation2 + $0x3c] sm:$0xff]
    %v74 = vld [vmem:[#allocation2 + $0x44] sm:$0xff]
    %v75 = vld [vmem:[#allocation2 + $0x4c] sm:$0xf]
    %v76 = vld [vmem:[%s2] sm:$0x1f]
    %v78 = vlaneseq
    %v79 = vshrl.u32 %v78, 7
    %v80 = vsub.s32 0, %v79
    %v81 = vrot.slane %v76, %v80
    %v82 = vlaneseq
    %v83 = vshrl.u32 %v82, 7
    %v84 = vsub.s32 1, %v83
    %v85 = vrot.slane %v76, %v84
    %v86 = vlaneseq
    %v87 = vshrl.u32 %v86, 7
    %v88 = vsub.s32 2, %v87
    %v89 = vrot.slane %v76, %v88
    %v90 = vlaneseq
    %v91 = vshrl.u32 %v90, 7
    %v92 = vsub.s32 3, %v91
    %v93 = vrot.slane %v76, %v92
    %v94 = vlaneseq
    %v95 = vshrl.u32 %v94, 7
    %v96 = vsub.s32 4, %v95
    %v97 = vrot.slane %v76, %v96
    %v115 = vunpack.c.l.b16 %v64
    %v116 = vunpack.c.h.b16 %v64
    %v117 = vunpack.c.l.b16 %v65
    %v118 = vunpack.c.h.b16 %v65
    %v119 = vunpack.c.l.b16 %v66
    %v120 = vunpack.c.l.b16 %v67
    %v121 = vunpack.c.h.b16 %v67
    %v122 = vunpack.c.l.b16 %v68
    %v123 = vunpack.c.h.b16 %v68
    %v124 = vunpack.c.l.b16 %v69
    %v125 = vunpack.c.l.b16 %v70
    %v126 = vunpack.c.h.b16 %v70
    %v127 = vunpack.c.l.b16 %v71
    %v128 = vunpack.c.h.b16 %v71
    %v129 = vunpack.c.l.b16 %v72
    %v130 = vunpack.c.l.b16 %v73
    %v131 = vunpack.c.h.b16 %v73
    %v132 = vunpack.c.l.b16 %v74
    %v133 = vunpack.c.h.b16 %v74
    %v134 = vunpack.c.l.b16 %v75
    %v135 = vpack.c.b16 %v120, %v115
    %v136 = vpack.c.b16 %v121, %v116
    %v137 = vpack.c.b16 %v122, %v117
    %v138 = vpack.c.b16 %v123, %v118
    %v139 = vpack.c.b16 %v124, %v119
    %v140 = vpack.c.b16 %v130, %v125
    %v141 = vpack.c.b16 %v131, %v126
    %v142 = vpack.c.b16 %v132, %v127
    %v143 = vpack.c.b16 %v133, %v128
    %v144 = vpack.c.b16 %v134, %v129
    %vm155 = vcmask 261120
    %v157 = vsel %vm155, %v63, 0
    %159 = vmatprep.subr.bf16.mxu0 0
    %160 = vmatpush1.bf16.msra.mxu0 0
    %161 = vmatprep.subr.bf16.mxu0 0
    %162 = vmatpush1.bf16.msra.mxu0 0
    %163 = vmatprep.subr.bf16.mxu0 0
    %164 = vmatpush1.bf16.msra.mxu0 0
    %165 = vmatprep.subr.bf16.mxu0 0
    %166 = vmatpush1.bf16.msra.mxu0 0
    %167 = vmatprep.subr.bf16.mxu0 0
    %168 = vmatpush1.bf16.msra.mxu0 0
    %169 = vmatprep.subr.bf16.mxu0 0
    %170 = vmatpush1.bf16.msra.mxu0 0
    %171 = vmatprep.subr.bf16.mxu0 %v141
    %172 = vmatpush1.bf16.msra.mxu0 %v140
    %173 = vmatprep.subr.bf16.mxu0 %v136
    %174 = vmatpush1.bf16.msra.mxu0 %v135
    %175 = vmatprep.subr.bf16.mxu0 0
    %176 = vmatpush2.bf16.msra.mxu0 0
    %177 = vmatprep.subr.bf16.mxu0 0
    %178 = vmatpush2.bf16.msra.mxu0 0
    %179 = vmatprep.subr.bf16.mxu0 0
    %180 = vmatpush2.bf16.msra.mxu0 0
    %181 = vmatprep.subr.bf16.mxu0 0
    %182 = vmatpush2.bf16.msra.mxu0 0
    %183 = vmatprep.subr.bf16.mxu0 0
    %184 = vmatpush2.bf16.msra.mxu0 0
    %185 = vmatprep.subr.bf16.mxu0 0
    %186 = vmatpush2.bf16.msra.mxu0 0
    %187 = vmatprep.subr.bf16.mxu0 0
    %188 = vmatpush2.bf16.msra.mxu0 0
    %189 = vmatprep.subr.bf16.mxu0 0
    %190 = vmatpush2.bf16.msra.mxu0 0
    %191 = vmatprep.mubr.bf16.mxu0 0
    %192 = vmatmul.mubr.bf16.gmra.mxu0 %v157
    %v193 = vpop.f32.mrf.mxu0
    %v194 = vadd.f32 %v81, %v193
    %v195 = vpop.f32.mrf.mxu0
    %v196 = vadd.f32 %v85, %v195
    %v197 = vpop.f32.mrf.mxu0
    %v198 = vpop.f32.mrf.mxu0
    %199 = vdwg.mxu0
    %200 = vmatprep.subr.bf16.mxu0 0
    %201 = vmatpush1.bf16.msra.mxu0 0
    %202 = vmatprep.subr.bf16.mxu0 0
    %203 = vmatpush1.bf16.msra.mxu0 0
    %204 = vmatprep.subr.bf16.mxu0 0
    %205 = vmatpush1.bf16.msra.mxu0 0
    %206 = vmatprep.subr.bf16.mxu0 0
    %207 = vmatpush1.bf16.msra.mxu0 0
    %208 = vmatprep.subr.bf16.mxu0 0
    %209 = vmatpush1.bf16.msra.mxu0 0
    %210 = vmatprep.subr.bf16.mxu0 0
    %211 = vmatpush1.bf16.msra.mxu0 0
    %212 = vmatprep.subr.bf16.mxu0 %v143
    %213 = vmatpush1.bf16.msra.mxu0 %v142
    %214 = vmatprep.subr.bf16.mxu0 %v138
    %215 = vmatpush1.bf16.msra.mxu0 %v137
    %216 = vmatprep.subr.bf16.mxu0 0
    %217 = vmatpush2.bf16.msra.mxu0 0
    %218 = vmatprep.subr.bf16.mxu0 0
    %219 = vmatpush2.bf16.msra.mxu0 0
    %220 = vmatprep.subr.bf16.mxu0 0
    %221 = vmatpush2.bf16.msra.mxu0 0
    %222 = vmatprep.subr.bf16.mxu0 0
    %223 = vmatpush2.bf16.msra.mxu0 0
    %224 = vmatprep.subr.bf16.mxu0 0
    %225 = vmatpush2.bf16.msra.mxu0 0
    %226 = vmatprep.subr.bf16.mxu0 0
    %227 = vmatpush2.bf16.msra.mxu0 0
    %228 = vmatprep.subr.bf16.mxu0 0
    %229 = vmatpush2.bf16.msra.mxu0 0
    %230 = vmatprep.subr.bf16.mxu0 0
    %231 = vmatpush2.bf16.msra.mxu0 0
    %232 = vmatprep.mubr.bf16.mxu0 0
    %233 = vmatmul.mubr.bf16.gmra.mxu0 %v157
    %v234 = vpop.f32.mrf.mxu0
    %v235 = vadd.f32 %v89, %v234
    %v236 = vpop.f32.mrf.mxu0
    %v237 = vadd.f32 %v93, %v236
    %v238 = vpop.f32.mrf.mxu0
    %v239 = vpop.f32.mrf.mxu0
    %240 = vdwg.mxu0
    %241 = vmatprep.subr.bf16.mxu0 0
    %242 = vmatpush1.bf16.msra.mxu0 0
    %243 = vmatprep.subr.bf16.mxu0 0
    %244 = vmatpush1.bf16.msra.mxu0 0
    %245 = vmatprep.subr.bf16.mxu0 0
    %246 = vmatpush1.bf16.msra.mxu0 0
    %247 = vmatprep.subr.bf16.mxu0 0
    %248 = vmatpush1.bf16.msra.mxu0 0
    %249 = vmatprep.subr.bf16.mxu0 0
    %250 = vmatpush1.bf16.msra.mxu0 0
    %251 = vmatprep.subr.bf16.mxu0 0
    %252 = vmatpush1.bf16.msra.mxu0 0
    %253 = vmatprep.subr.bf16.mxu0 0
    %254 = vmatpush1.bf16.msra.mxu0 %v144
    %255 = vmatprep.subr.bf16.mxu0 0
    %256 = vmatpush1.bf16.msra.mxu0 %v139
    %257 = vmatprep.subr.bf16.mxu0 0
    %258 = vmatpush2.bf16.msra.mxu0 0
    %259 = vmatprep.subr.bf16.mxu0 0
    %260 = vmatpush2.bf16.msra.mxu0 0
    %261 = vmatprep.subr.bf16.mxu0 0
    %262 = vmatpush2.bf16.msra.mxu0 0
    %263 = vmatprep.subr.bf16.mxu0 0
    %264 = vmatpush2.bf16.msra.mxu0 0
    %265 = vmatprep.subr.bf16.mxu0 0
    %266 = vmatpush2.bf16.msra.mxu0 0
    %267 = vmatprep.subr.bf16.mxu0 0
    %268 = vmatpush2.bf16.msra.mxu0 0
    %269 = vmatprep.subr.bf16.mxu0 0
    %270 = vmatpush2.bf16.msra.mxu0 0
    %271 = vmatprep.subr.bf16.mxu0 0
    %272 = vmatpush2.bf16.msra.mxu0 0
    %273 = vmatprep.mubr.bf16.mxu0 0
    %274 = vmatmul.mubr.bf16.gmra.mxu0 %v157
    %v275 = vpop.f32.mrf.mxu0
    %v276 = vadd.f32 %v97, %v275
    %v277 = vpop.f32.mrf.mxu0
    %v278 = vpop.f32.mrf.mxu0
    %v279 = vpop.f32.mrf.mxu0
    %280 = vdwg.mxu0
    %v281 = vmax.f32 %v194, 0.0
    %v282 = vmax.f32 %v196, 0.0
    %v283 = vmax.f32 %v235, 0.0
    %v284 = vmax.f32 %v237, 0.0
    %v285 = vmax.f32 %v276, 0.0
    %v286 = vpack.c.bf16 %v281, %v281
    %v287 = vld [vmem:[%s3] sm:$0xf]
    %v288 = vld [vmem:[%s3 + $0x4] sm:$0xf]
    %v289 = vld [vmem:[%s3 + $0x8] sm:$0xf]
    %v290 = vld [vmem:[%s3 + $0xc] sm:$0xf]
    %v291 = vld [vmem:[%s3 + $0x10] sm:$0xf]
    %v292 = vld [vmem:[%s3 + $0x14] sm:$0xf]
    %v293 = vld [vmem:[%s3 + $0x18] sm:$0xf]
    %v294 = vld [vmem:[%s3 + $0x1c] sm:$0xf]
    %v295 = vld [vmem:[%s3 + $0x20] sm:$0xf]
    %v296 = vld [vmem:[%s3 + $0x24] sm:$0xf]
    %v297 = vld [vmem:[%s3 + $0x28] sm:$0xf]
    %v298 = vld [vmem:[%s3 + $0x2c] sm:$0xf]
    %v299 = vld [vmem:[%s3 + $0x30] sm:$0xf]
    %v300 = vld [vmem:[%s3 + $0x34] sm:$0xf]
    %v301 = vld [vmem:[%s3 + $0x38] sm:$0xf]
    %v302 = vld [vmem:[%s3 + $0x3c] sm:$0xf]
    %v303 = vld [vmem:[%s4] sm:$0x1]
    %v305 = vlaneseq
    %v306 = vshrl.u32 %v305, 7
    %v307 = vsub.s32 0, %v306
    %v308 = vrot.slane %v303, %v307
    %v326 = vunpack.c.l.b16 %v287
    %v327 = vunpack.c.l.b16 %v288
    %v328 = vunpack.c.l.b16 %v289
    %v329 = vunpack.c.l.b16 %v290
    %v330 = vunpack.c.l.b16 %v291
    %v331 = vunpack.c.l.b16 %v292
    %v332 = vunpack.c.l.b16 %v293
    %v333 = vunpack.c.l.b16 %v294
    %v334 = vunpack.c.l.b16 %v295
    %v335 = vunpack.c.l.b16 %v296
    %v336 = vunpack.c.l.b16 %v297
    %v337 = vunpack.c.l.b16 %v298
    %v338 = vunpack.c.l.b16 %v299
    %v339 = vunpack.c.l.b16 %v300
    %v340 = vunpack.c.l.b16 %v301
    %v341 = vunpack.c.l.b16 %v302
    %v342 = vpack.c.b16 %v327, %v326
    %v343 = vpack.c.b16 %v329, %v328
    %v344 = vpack.c.b16 %v331, %v330
    %v345 = vpack.c.b16 %v333, %v332
    %v346 = vpack.c.b16 %v335, %v334
    %v347 = vpack.c.b16 %v337, %v336
    %v348 = vpack.c.b16 %v339, %v338
    %v349 = vpack.c.b16 %v341, %v340
    %358 = vmatprep.subr.bf16.mxu0 0
    %359 = vmatpush1.bf16.msra.mxu0 %v349
    %360 = vmatprep.subr.bf16.mxu0 0
    %361 = vmatpush1.bf16.msra.mxu0 %v348
    %362 = vmatprep.subr.bf16.mxu0 0
    %363 = vmatpush1.bf16.msra.mxu0 %v347
    %364 = vmatprep.subr.bf16.mxu0 0
    %365 = vmatpush1.bf16.msra.mxu0 %v346
    %366 = vmatprep.subr.bf16.mxu0 0
    %367 = vmatpush1.bf16.msra.mxu0 %v345
    %368 = vmatprep.subr.bf16.mxu0 0
    %369 = vmatpush1.bf16.msra.mxu0 %v344
    %370 = vmatprep.subr.bf16.mxu0 0
    %371 = vmatpush1.bf16.msra.mxu0 %v343
    %372 = vmatprep.subr.bf16.mxu0 0
    %373 = vmatpush1.bf16.msra.mxu0 %v342
    %374 = vmatprep.subr.bf16.mxu0 0
    %375 = vmatpush2.bf16.msra.mxu0 0
    %376 = vmatprep.subr.bf16.mxu0 0
    %377 = vmatpush2.bf16.msra.mxu0 0
    %378 = vmatprep.subr.bf16.mxu0 0
    %379 = vmatpush2.bf16.msra.mxu0 0
    %380 = vmatprep.subr.bf16.mxu0 0
    %381 = vmatpush2.bf16.msra.mxu0 0
    %382 = vmatprep.subr.bf16.mxu0 0
    %383 = vmatpush2.bf16.msra.mxu0 0
    %384 = vmatprep.subr.bf16.mxu0 0
    %385 = vmatpush2.bf16.msra.mxu0 0
    %386 = vmatprep.subr.bf16.mxu0 0
    %387 = vmatpush2.bf16.msra.mxu0 0
    %388 = vmatprep.subr.bf16.mxu0 0
    %389 = vmatpush2.bf16.msra.mxu0 0
    %390 = vmatprep.mubr.bf16.mxu0 0
    %391 = vmatmul.mubr.bf16.gmra.mxu0 %v286
    %v392 = vpop.f32.mrf.mxu0
    %v393 = vadd.f32 %v308, %v392
    %v394 = vpop.f32.mrf.mxu0
    %v395 = vpop.f32.mrf.mxu0
    %v396 = vpop.f32.mrf.mxu0
    %397 = vdwg.mxu0
    %vm398 = vcmask 31744
    %v399 = vsel %vm398, %v393, -inf
    %400 = vmax.xlane.f32.xlu0 %v399
    %v401 = vpop.xlane.xlu0 %400
    %v402 = vsub.f32 %v393, %v401
    %v403 = vmul.f32 %v402, 1.442695
    %v404 = vpow.pop %v403
    %v405 = vsel %vm398, %v404, 0.0
    %406 = vadd.xlane.f32.xlu0 %v405
    %v407 = vpop.xlane.xlu0 %406
    %v408 = vrcp.pop %v407
    %v409 = vmul.f32 %v404, %v408
    %411 = vset.pattern.permute.xlu0 0
    %412 = vperm.xlu0 %411, %v409
    %v413 = vpop.permute.xlu0 %412
    %415 = vset.pattern.permute.xlu0 1
    %416 = vperm.xlu0 %415, %v409
    %v417 = vpop.permute.xlu0 %416
    %419 = vset.pattern.permute.xlu0 2
    %420 = vperm.xlu0 %419, %v409
    %v421 = vpop.permute.xlu0 %420
    %423 = vset.pattern.permute.xlu0 3
    %424 = vperm.xlu0 %423, %v409
    %v425 = vpop.permute.xlu0 %424
    %v427 = vmul.f32 %v282, %v413
    %v428 = vmul.f32 %v283, %v417
    %v429 = vmul.f32 %v284, %v421
    %v430 = vmul.f32 %v285, %v425
    %v431 = vpack.c.bf16 %v427, %v427
    %v432 = vpack.c.bf16 %v428, %v428
    %v433 = vpack.c.bf16 %v429, %v429
    %v434 = vpack.c.bf16 %v430, %v430
    %v435 = vld [vmem:[#allocation5] sm:$0xf]
    %v436 = vld [vmem:[#allocation5 + $0x4] sm:$0xf]
    %v437 = vld [vmem:[#allocation5 + $0x8] sm:$0xf]
    %v438 = vld [vmem:[#allocation5 + $0xc] sm:$0xf]
    %v439 = vld [vmem:[#allocation5 + $0x10] sm:$0xf]
    %v440 = vld [vmem:[#allocation5 + $0x14] sm:$0xf]
    %v441 = vld [vmem:[#allocation5 + $0x18] sm:$0xf]
    %v442 = vld [vmem:[#allocation5 + $0x1c] sm:$0xf]
    %v443 = vld [vmem:[#allocation5 + $0x20] sm:$0xf]
    %v444 = vld [vmem:[#allocation5 + $0x24] sm:$0xf]
    %v445 = vld [vmem:[#allocation5 + $0x28] sm:$0xf]
    %v446 = vld [vmem:[#allocation5 + $0x2c] sm:$0xf]
    %v447 = vld [vmem:[#allocation5 + $0x30] sm:$0xf]
    %v448 = vld [vmem:[#allocation5 + $0x34] sm:$0xf]
    %v449 = vld [vmem:[#allocation5 + $0x38] sm:$0xf]
    %v450 = vld [vmem:[#allocation5 + $0x3c] sm:$0xf]
    %v451 = vld [vmem:[#allocation5 + $0x40] sm:$0xf]
    %v452 = vld [vmem:[#allocation5 + $0x44] sm:$0xf]
    %v453 = vld [vmem:[#allocation5 + $0x48] sm:$0xf]
    %v454 = vld [vmem:[#allocation5 + $0x4c] sm:$0xf]
    %v455 = vld [vmem:[#allocation5 + $0x50] sm:$0xf]
    %v456 = vld [vmem:[#allocation5 + $0x54] sm:$0xf]
    %v457 = vld [vmem:[#allocation5 + $0x58] sm:$0xf]
    %v458 = vld [vmem:[#allocation5 + $0x5c] sm:$0xf]
    %v459 = vld [vmem:[#allocation5 + $0x60] sm:$0xf]
    %v460 = vld [vmem:[#allocation5 + $0x64] sm:$0xf]
    %v461 = vld [vmem:[#allocation5 + $0x68] sm:$0xf]
    %v462 = vld [vmem:[#allocation5 + $0x6c] sm:$0xf]
    %v463 = vld [vmem:[#allocation5 + $0x70] sm:$0xf]
    %v464 = vld [vmem:[#allocation5 + $0x74] sm:$0xf]
    %v465 = vld [vmem:[#allocation5 + $0x78] sm:$0xf]
    %v466 = vld [vmem:[#allocation5 + $0x7c] sm:$0xf]
    %v467 = vld [vmem:[#allocation5 + $0x80] sm:$0xf]
    %v468 = vld [vmem:[#allocation5 + $0x84] sm:$0xf]
    %v469 = vld [vmem:[#allocation5 + $0x88] sm:$0xf]
    %v470 = vld [vmem:[#allocation5 + $0x8c] sm:$0xf]
    %v471 = vld [vmem:[#allocation5 + $0x90] sm:$0xf]
    %v472 = vld [vmem:[#allocation5 + $0x94] sm:$0xf]
    %v473 = vld [vmem:[#allocation5 + $0x98] sm:$0xf]
    %v474 = vld [vmem:[#allocation5 + $0x9c] sm:$0xf]
    %v475 = vld [vmem:[#allocation5 + $0xa0] sm:$0xf]
    %v476 = vld [vmem:[#allocation5 + $0xa4] sm:$0xf]
    %v477 = vld [vmem:[#allocation5 + $0xa8] sm:$0xf]
    %v478 = vld [vmem:[#allocation5 + $0xac] sm:$0xf]
    %v479 = vld [vmem:[#allocation5 + $0xb0] sm:$0xf]
    %v480 = vld [vmem:[#allocation5 + $0xb4] sm:$0xf]
    %v481 = vld [vmem:[#allocation5 + $0xb8] sm:$0xf]
    %v482 = vld [vmem:[#allocation5 + $0xbc] sm:$0xf]
    %v483 = vld [vmem:[#allocation5 + $0xc0] sm:$0xf]
    %v484 = vld [vmem:[#allocation5 + $0xc4] sm:$0xf]
    %v485 = vld [vmem:[#allocation5 + $0xc8] sm:$0xf]
    %v486 = vld [vmem:[#allocation5 + $0xcc] sm:$0xf]
    %v487 = vld [vmem:[#allocation5 + $0xd0] sm:$0xf]
    %v488 = vld [vmem:[#allocation5 + $0xd4] sm:$0xf]
    %v489 = vld [vmem:[#allocation5 + $0xd8] sm:$0xf]
    %v490 = vld [vmem:[#allocation5 + $0xdc] sm:$0xf]
    %v491 = vld [vmem:[#allocation5 + $0xe0] sm:$0xf]
    %v492 = vld [vmem:[#allocation5 + $0xe4] sm:$0xf]
    %v493 = vld [vmem:[#allocation5 + $0xe8] sm:$0xf]
    %v494 = vld [vmem:[#allocation5 + $0xec] sm:$0xf]
    %v495 = vld [vmem:[#allocation5 + $0xf0] sm:$0xf]
    %v496 = vld [vmem:[#allocation5 + $0xf4] sm:$0xf]
    %v497 = vld [vmem:[#allocation5 + $0xf8] sm:$0xf]
    %v498 = vld [vmem:[#allocation5 + $0xfc] sm:$0xf]
    %v499 = vld [vmem:[%s6] sm:$0xf]
    %v500 = vsel %vm398, %v409, 0
    %vm502 = vcmask 1043456
    %v504 = vsel %vm502, %v499, 0
    %506 = vmatprep.subr.mxu0 0.0
    %507 = vmatpush1.msra.mxu0 0.0
    %508 = vmatprep.subr.mxu0 0.0
    %509 = vmatpush1.msra.mxu0 0.0
    %510 = vmatprep.subr.mxu0 0.0
    %511 = vmatpush1.msra.mxu0 0.0
    %512 = vmatprep.subr.mxu0 0.0
    %513 = vmatpush1.msra.mxu0 0.0
    %514 = vmatprep.subr.mxu0 0.0
    %515 = vmatpush1.msra.mxu0 0.0
    %516 = vmatprep.subr.mxu0 0.0
    %517 = vmatpush1.msra.mxu0 0.0
    %518 = vmatprep.subr.mxu0 0.0
    %519 = vmatpush1.msra.mxu0 0.0
    %520 = vmatprep.subr.mxu0 0.0
    %521 = vmatpush1.msra.mxu0 0.0
    %522 = vmatprep.subr.mxu0 0.0
    %523 = vmatpush1.msra.mxu0 0.0
    %524 = vmatprep.subr.mxu0 0.0
    %525 = vmatpush1.msra.mxu0 0.0
    %526 = vmatprep.subr.mxu0 0.0
    %527 = vmatpush1.msra.mxu0 0.0
    %528 = vmatprep.subr.mxu0 0.0
    %529 = vmatpush1.msra.mxu0 0.0
    %530 = vmatprep.subr.mxu0 0.0
    %531 = vmatpush1.msra.mxu0 0.0
    %532 = vmatprep.subr.mxu0 0.0
    %533 = vmatpush1.msra.mxu0 0.0
    %534 = vmatprep.subr.mxu0 0.0
    %535 = vmatpush1.msra.mxu0 0.0
    %536 = vmatprep.subr.mxu0 0.0
    %537 = vmatpush1.msra.mxu0 %v504
    %538 = vmatprep.subr.mxu0 0.0
    %539 = vmatpush2.msra.mxu0 0.0
    %540 = vmatprep.subr.mxu0 0.0
    %541 = vmatpush2.msra.mxu0 0.0
    %542 = vmatprep.subr.mxu0 0.0
    %543 = vmatpush2.msra.mxu0 0.0
    %544 = vmatprep.subr.mxu0 0.0
    %545 = vmatpush2.msra.mxu0 0.0
    %546 = vmatprep.subr.mxu0 0.0
    %547 = vmatpush2.msra.mxu0 0.0
    %548 = vmatprep.subr.mxu0 0.0
    %549 = vmatpush2.msra.mxu0 0.0
    %550 = vmatprep.subr.mxu0 0.0
    %551 = vmatpush2.msra.mxu0 0.0
    %552 = vmatprep.subr.mxu0 0.0
    %553 = vmatpush2.msra.mxu0 0.0
    %554 = vmatprep.subr.mxu0 0.0
    %555 = vmatpush2.msra.mxu0 0.0
    %556 = vmatprep.subr.mxu0 0.0
    %557 = vmatpush2.msra.mxu0 0.0
    %558 = vmatprep.subr.mxu0 0.0
    %559 = vmatpush2.msra.mxu0 0.0
    %560 = vmatprep.subr.mxu0 0.0
    %561 = vmatpush2.msra.mxu0 0.0
    %562 = vmatprep.subr.mxu0 0.0
    %563 = vmatpush2.msra.mxu0 0.0
    %564 = vmatprep.subr.mxu0 0.0
    %565 = vmatpush2.msra.mxu0 0.0
    %566 = vmatprep.subr.mxu0 0.0
    %567 = vmatpush2.msra.mxu0 0.0
    %568 = vmatprep.subr.mxu0 0.0
    %569 = vmatpush2.msra.mxu0 0.0
    %570 = vmatprep.mubr.f32.mxu0 0.0
    %571 = vmatmul.mubr.f32.gmra.mxu0 %v500
    %v572 = vpop.f32.mrf.mxu0
    %v573 = vadd.f32 0.0, %v572
    %v574 = vpop.f32.mrf.mxu0
    %575 = vdwg.mxu0
    %v640 = vunpack.c.l.b16 %v435
    %v641 = vunpack.c.l.b16 %v436
    %v642 = vunpack.c.l.b16 %v437
    %v643 = vunpack.c.l.b16 %v438
    %v644 = vunpack.c.l.b16 %v439
    %v645 = vunpack.c.l.b16 %v440
    %v646 = vunpack.c.l.b16 %v441
    %v647 = vunpack.c.l.b16 %v442
    %v648 = vunpack.c.l.b16 %v443
    %v649 = vunpack.c.l.b16 %v444
    %v650 = vunpack.c.l.b16 %v445
    %v651 = vunpack.c.l.b16 %v446
    %v652 = vunpack.c.l.b16 %v447
    %v653 = vunpack.c.l.b16 %v448
    %v654 = vunpack.c.l.b16 %v449
    %v655 = vunpack.c.l.b16 %v450
    %v656 = vunpack.c.l.b16 %v451
    %v657 = vunpack.c.l.b16 %v452
    %v658 = vunpack.c.l.b16 %v453
    %v659 = vunpack.c.l.b16 %v454
    %v660 = vunpack.c.l.b16 %v455
    %v661 = vunpack.c.l.b16 %v456
    %v662 = vunpack.c.l.b16 %v457
    %v663 = vunpack.c.l.b16 %v458
    %v664 = vunpack.c.l.b16 %v459
    %v665 = vunpack.c.l.b16 %v460
    %v666 = vunpack.c.l.b16 %v461
    %v667 = vunpack.c.l.b16 %v462
    %v668 = vunpack.c.l.b16 %v463
    %v669 = vunpack.c.l.b16 %v464
    %v670 = vunpack.c.l.b16 %v465
    %v671 = vunpack.c.l.b16 %v466
    %v672 = vunpack.c.l.b16 %v467
    %v673 = vunpack.c.l.b16 %v468
    %v674 = vunpack.c.l.b16 %v469
    %v675 = vunpack.c.l.b16 %v470
    %v676 = vunpack.c.l.b16 %v471
    %v677 = vunpack.c.l.b16 %v472
    %v678 = vunpack.c.l.b16 %v473
    %v679 = vunpack.c.l.b16 %v474
    %v680 = vunpack.c.l.b16 %v475
    %v681 = vunpack.c.l.b16 %v476
    %v682 = vunpack.c.l.b16 %v477
    %v683 = vunpack.c.l.b16 %v478
    %v684 = vunpack.c.l.b16 %v479
    %v685 = vunpack.c.l.b16 %v480
    %v686 = vunpack.c.l.b16 %v481
    %v687 = vunpack.c.l.b16 %v482
    %v688 = vunpack.c.l.b16 %v483
    %v689 = vunpack.c.l.b16 %v484
    %v690 = vunpack.c.l.b16 %v485
    %v691 = vunpack.c.l.b16 %v486
    %v692 = vunpack.c.l.b16 %v487
    %v693 = vunpack.c.l.b16 %v488
    %v694 = vunpack.c.l.b16 %v489
    %v695 = vunpack.c.l.b16 %v490
    %v696 = vunpack.c.l.b16 %v491
    %v697 = vunpack.c.l.b16 %v492
    %v698 = vunpack.c.l.b16 %v493
    %v699 = vunpack.c.l.b16 %v494
    %v700 = vunpack.c.l.b16 %v495
    %v701 = vunpack.c.l.b16 %v496
    %v702 = vunpack.c.l.b16 %v497
    %v703 = vunpack.c.l.b16 %v498
    %v704 = vpack.c.b16 %v641, %v640
    %v705 = vpack.c.b16 %v643, %v642
    %v706 = vpack.c.b16 %v645, %v644
    %v707 = vpack.c.b16 %v647, %v646
    %v708 = vpack.c.b16 %v649, %v648
    %v709 = vpack.c.b16 %v651, %v650
    %v710 = vpack.c.b16 %v653, %v652
    %v711 = vpack.c.b16 %v655, %v654
    %v712 = vpack.c.b16 %v657, %v656
    %v713 = vpack.c.b16 %v659, %v658
    %v714 = vpack.c.b16 %v661, %v660
    %v715 = vpack.c.b16 %v663, %v662
    %v716 = vpack.c.b16 %v665, %v664
    %v717 = vpack.c.b16 %v667, %v666
    %v718 = vpack.c.b16 %v669, %v668
    %v719 = vpack.c.b16 %v671, %v670
    %v720 = vpack.c.b16 %v673, %v672
    %v721 = vpack.c.b16 %v675, %v674
    %v722 = vpack.c.b16 %v677, %v676
    %v723 = vpack.c.b16 %v679, %v678
    %v724 = vpack.c.b16 %v681, %v680
    %v725 = vpack.c.b16 %v683, %v682
    %v726 = vpack.c.b16 %v685, %v684
    %v727 = vpack.c.b16 %v687, %v686
    %v728 = vpack.c.b16 %v689, %v688
    %v729 = vpack.c.b16 %v691, %v690
    %v730 = vpack.c.b16 %v693, %v692
    %v731 = vpack.c.b16 %v695, %v694
    %v732 = vpack.c.b16 %v697, %v696
    %v733 = vpack.c.b16 %v699, %v698
    %v734 = vpack.c.b16 %v701, %v700
    %v735 = vpack.c.b16 %v703, %v702
    %768 = vmatprep.subr.bf16.mxu0 0
    %769 = vmatpush1.bf16.msra.mxu0 %v711
    %770 = vmatprep.subr.bf16.mxu0 0
    %771 = vmatpush1.bf16.msra.mxu0 %v710
    %772 = vmatprep.subr.bf16.mxu0 0
    %773 = vmatpush1.bf16.msra.mxu0 %v709
    %774 = vmatprep.subr.bf16.mxu0 0
    %775 = vmatpush1.bf16.msra.mxu0 %v708
    %776 = vmatprep.subr.bf16.mxu0 0
    %777 = vmatpush1.bf16.msra.mxu0 %v707
    %778 = vmatprep.subr.bf16.mxu0 0
    %779 = vmatpush1.bf16.msra.mxu0 %v706
    %780 = vmatprep.subr.bf16.mxu0 0
    %781 = vmatpush1.bf16.msra.mxu0 %v705
    %782 = vmatprep.subr.bf16.mxu0 0
    %783 = vmatpush1.bf16.msra.mxu0 %v704
    %784 = vmatprep.subr.bf16.mxu0 0
    %785 = vmatpush2.bf16.msra.mxu0 %v719
    %786 = vmatprep.subr.bf16.mxu0 0
    %787 = vmatpush2.bf16.msra.mxu0 %v718
    %788 = vmatprep.subr.bf16.mxu0 0
    %789 = vmatpush2.bf16.msra.mxu0 %v717
    %790 = vmatprep.subr.bf16.mxu0 0
    %791 = vmatpush2.bf16.msra.mxu0 %v716
    %792 = vmatprep.subr.bf16.mxu0 0
    %793 = vmatpush2.bf16.msra.mxu0 %v715
    %794 = vmatprep.subr.bf16.mxu0 0
    %795 = vmatpush2.bf16.msra.mxu0 %v714
    %796 = vmatprep.subr.bf16.mxu0 0
    %797 = vmatpush2.bf16.msra.mxu0 %v713
    %798 = vmatprep.subr.bf16.mxu0 0
    %799 = vmatpush2.bf16.msra.mxu0 %v712
    %800 = vmatprep.mubr.bf16.mxu0 %v432
    %801 = vmatmul.mubr.bf16.gmra.mxu0 %v431
    %v802 = vpop.f32.mrf.mxu0
    %v803 = vadd.f32 %v573, %v802
    %v804 = vpop.f32.mrf.mxu0
    %v805 = vpop.f32.mrf.mxu0
    %v806 = vpop.f32.mrf.mxu0
    %807 = vdwg.mxu0
    %808 = vmatprep.subr.bf16.mxu0 0
    %809 = vmatpush1.bf16.msra.mxu0 %v727
    %810 = vmatprep.subr.bf16.mxu0 0
    %811 = vmatpush1.bf16.msra.mxu0 %v726
    %812 = vmatprep.subr.bf16.mxu0 0
    %813 = vmatpush1.bf16.msra.mxu0 %v725
    %814 = vmatprep.subr.bf16.mxu0 0
    %815 = vmatpush1.bf16.msra.mxu0 %v724
    %816 = vmatprep.subr.bf16.mxu0 0
    %817 = vmatpush1.bf16.msra.mxu0 %v723
    %818 = vmatprep.subr.bf16.mxu0 0
    %819 = vmatpush1.bf16.msra.mxu0 %v722
    %820 = vmatprep.subr.bf16.mxu0 0
    %821 = vmatpush1.bf16.msra.mxu0 %v721
    %822 = vmatprep.subr.bf16.mxu0 0
    %823 = vmatpush1.bf16.msra.mxu0 %v720
    %824 = vmatprep.subr.bf16.mxu0 0
    %825 = vmatpush2.bf16.msra.mxu0 %v735
    %826 = vmatprep.subr.bf16.mxu0 0
    %827 = vmatpush2.bf16.msra.mxu0 %v734
    %828 = vmatprep.subr.bf16.mxu0 0
    %829 = vmatpush2.bf16.msra.mxu0 %v733
    %830 = vmatprep.subr.bf16.mxu0 0
    %831 = vmatpush2.bf16.msra.mxu0 %v732
    %832 = vmatprep.subr.bf16.mxu0 0
    %833 = vmatpush2.bf16.msra.mxu0 %v731
    %834 = vmatprep.subr.bf16.mxu0 0
    %835 = vmatpush2.bf16.msra.mxu0 %v730
    %836 = vmatprep.subr.bf16.mxu0 0
    %837 = vmatpush2.bf16.msra.mxu0 %v729
    %838 = vmatprep.subr.bf16.mxu0 0
    %839 = vmatpush2.bf16.msra.mxu0 %v728
    %840 = vmatprep.mubr.bf16.mxu0 %v434
    %841 = vmatmul.mubr.bf16.gmra.mxu0 %v433
    %v842 = vpop.f32.mrf.mxu0
    %v843 = vadd.f32 %v803, %v842
    %v844 = vpop.f32.mrf.mxu0
    %v845 = vpop.f32.mrf.mxu0
    %v846 = vpop.f32.mrf.mxu0
    %847 = vdwg.mxu0
    %848 = vadd.xlane.f32.xlu0 %v843
    %v849 = vpop.xlane.xlu0 %848
    %v850 = vrcp.pop 128.0
    %v851 = vmul.f32 %v849, %v850
    %v852 = vsub.f32 %v843, %v851
    %v853 = vmul.f32 %v852, %v852
    %854 = vadd.xlane.f32.xlu0 %v853
    %v855 = vpop.xlane.xlu0 %854
    %v856 = vmul.f32 %v855, %v850
    %v857 = vadd.f32 %v856, 1e-05
    %v858 = vrsqrt.pop %v857
    %v859 = vmul.f32 %v852, %v858
    %v860 = vld [vmem:[%s7] sm:$0x1]
    %v862 = vlaneseq
    %v863 = vshrl.u32 %v862, 7
    %v864 = vsub.s32 0, %v863
    %v865 = vrot.slane %v860, %v864
    %v867 = vmul.f32 %v859, %v865
    %v868 = vld [vmem:[%s8] sm:$0x1]
    %v870 = vlaneseq
    %v871 = vshrl.u32 %v870, 7
    %v872 = vsub.s32 0, %v871
    %v873 = vrot.slane %v868, %v872
    %v875 = vadd.f32 %v867, %v873
    %876 = vst [vmem:[#allocation7] sm:$0xff] %v875
    // Predicated region
    $region46: #{tpu_custom_call.1} parent=1 // pred_check
      _
    $region47: #{tpu_custom_call.1} parent=1 // pred_check_branch
      %878 = sbr.rel (0) target = $region49
    $region48: #{tpu_custom_call.1} parent=1 // pred_region
      %s880 = ssub.s32 128, 128
      %881 = vsyncadd [#allocation4], %s880
      %s883 = sshll.u32 [#allocation7], 4
      %s884 = int_to_ptr.vmem [resolvable:$true] %s883
      %886 = dma.vmem_to_hbm [thread:$0]  %s884, 128, %s9, [#allocation4]
    $region49: #{tpu_custom_call.1} parent=1 // pred_fallthru
      _
    // Predicated region
    $region50: #{tpu_custom_call.1} parent=1 // pred_check
      _
    $region51: #{tpu_custom_call.1} parent=1 // pred_check_branch
      %888 = sbr.rel (0) target = $region53
    $region52: #{tpu_custom_call.1} parent=1 // pred_region
      %889 = dma.done [#allocation4], 128
    $region53: #{tpu_custom_call.1} parent=1 // pred_fallthru
      _
    %890 = vsyncpa [#allocation3], 1
    %891 = vsyncpa [#allocation6], 1
    %892 = vsyncpa [#allocation4], 1

</llo_original>
